<compile_context>
chip_gen: v6e
topology: v6e:2x2x1
jax: 0.10.0
libtpu: 0.0.40
codegen_flags: <defaults>
</compile_context>

<pallas_src>
import functools

import jax
import jax.numpy as jnp
from jax.experimental import pallas as pl
from jax.experimental.pallas import tpu as pltpu

LANE = 128
SUBLANE = 8
ACC_ROWS = 512                 # fixed f32 accumulator height (256 KiB scratch)
TILE_BYTES = 2 << 20           # ~2 MiB input block (perf review: 2-4 MiB)
NCORES = 2                     # leading 'parallel' axis for v7x megacore
VMEM_LIMIT_BYTES = 32 << 20    # explicit: large tiles must also fit on v5e


def _per_elem_loss_f32(x, gan_type, t):
    """Per-element loss on f32 x.  (wgan-gp sign is applied in the wrapper.)"""
    if gan_type in ("gan", "ragan"):
        # numerically-stable BCEWithLogits: max(x,0) - x*t + log1p(exp(-|x|))
        return jnp.maximum(x, 0.0) - x * t + jnp.log1p(jnp.exp(-jnp.abs(x)))
    if gan_type == "lsgan":
        d = x - t
        return d * d
    return x  # wgan-gp: accumulate raw x


def _fold_rows(v, rows, chunk):
    """Sum a (rows, LANE) f32 value down to (chunk, LANE) via row-chunk adds."""
    s = v[0:chunk]
    for k in range(1, rows // chunk):
        s = s + v[k * chunk:(k + 1) * chunk]
    return s


def _gan_loss_kernel(params_ref, x_ref, out_ref, acc_ref, *,
                     gan_type, tm, acc_rows, bpc, blocks_total, m_rem):
    c = pl.program_id(0)          # core-split axis ("parallel")
    j = pl.program_id(1)          # reduction axis ("arbitrary")

    @pl.when(j == 0)
    def _():
        acc_ref[...] = jnp.zeros_like(acc_ref)

    g = c * bpc + j               # global block index (may exceed blocks_total-1)
    t = params_ref[0]
    x = x_ref[...].astype(jnp.float32)          # native dtype in HBM, upcast in-register
    per = _per_elem_loss_f32(x, gan_type, t)    # (tm, LANE) f32

    def _acc(v):
        acc_ref[...] += _fold_rows(v, tm, acc_rows)

    last_real = blocks_total - 1
    full_cover = (NCORES * bpc == blocks_total)
    if m_rem == 0 and full_cover:
        # Every (c, j) maps to a distinct full block: no masking, no gating.
        _acc(per)
    else:
        @pl.when(g < last_real)
        def _():
            _acc(per)

        @pl.when(g == last_real)
        def _():
            if m_rem:
                row = jax.lax.broadcasted_iota(jnp.int32, (tm, LANE), 0)
                _acc(jnp.where(row < m_rem, per, 0.0))
            else:
                _acc(per)
        # g > last_real (clamped duplicate block): contributes nothing.

    @pl.when(j == pl.num_programs(1) - 1)
    def _():
        # Fold the resident accumulator to one lane-dense (8, 128) block.
        out_ref[0] = _fold_rows(acc_ref[...], acc_rows, SUBLANE)


@functools.lru_cache(maxsize=None)
def _build_loss_fn(gan_type, shape, itemsize):
    """One compiled loss fn per (gan_type, input shape, dtype itemsize)."""
    n = 1
    for d in shape:
        n *= d
    m_total = n // LANE
    m_main = (m_total // SUBLANE) * SUBLANE     # rows handled by the kernel
    tail = n - m_main * LANE                    # trailing elements handled in JAX

    if m_main == 0:
        # Tiny input: not worth a kernel launch.
        def tiny_fn(x, params):
            xf = x.reshape(-1).astype(jnp.float32)
            total = jnp.sum(_per_elem_loss_f32(xf, gan_type, params[0]))
            if gan_type == "wgan-gp":
                total = total * params[1]
            return total / jnp.float32(n)
        return jax.jit(tiny_fn)

    rows_budget = max(SUBLANE, TILE_BYTES // (LANE * itemsize))
    if m_main >= ACC_ROWS:
        tm = (min(rows_budget, m_main) // ACC_ROWS) * ACC_ROWS
        acc_rows = ACC_ROWS
    else:
        tm = m_main                 # multiple of 8, < 512 rows
        acc_rows = m_main
    blocks_total = pl.cdiv(m_main, tm)
    m_rem = m_main % tm
    bpc = pl.cdiv(blocks_total, NCORES)   # blocks per core

    kernel = functools.partial(
        _gan_loss_kernel, gan_type=gan_type, tm=tm, acc_rows=acc_rows,
        bpc=bpc, blocks_total=blocks_total, m_rem=m_rem)

    def x_index(c, j):
        # Clamp so an odd block count never produces an out-of-range block;
        # the duplicate block's contribution is gated off in the kernel.
        return (jnp.minimum(c * bpc + j, blocks_total - 1), 0)

    call = pl.pallas_call(
        kernel,
        out_shape=jax.ShapeDtypeStruct((NCORES, SUBLANE, LANE), jnp.float32),
        grid_spec=pltpu.PrefetchScalarGridSpec(
            num_scalar_prefetch=0,
            grid=(NCORES, bpc),
            in_specs=[
                pl.BlockSpec(memory_space=pltpu.MemorySpace.SMEM),   # [t, sign]
                pl.BlockSpec((tm, LANE), x_index),
            ],
            out_specs=pl.BlockSpec((1, SUBLANE, LANE), lambda c, j: (c, 0, 0)),
            scratch_shapes=[pltpu.VMEM((acc_rows, LANE), jnp.float32)],
        ),
        compiler_params=pltpu.CompilerParams(
            dimension_semantics=("parallel", "arbitrary"),
            vmem_limit_bytes=VMEM_LIMIT_BYTES),
    )

    def fn(x, params):
        flat = x.reshape(-1)                            # keep native dtype
        # Free reshape when n is 1024-aligned; otherwise XLA materializes the
        # aligned prefix once (accepted for the uncommon ragged-tail shapes).
        main = flat[: m_main * LANE].reshape(m_main, LANE)
        partial = call(params, main)                    # (NCORES, 8, 128) f32
        total = jnp.sum(partial)                        # 2048-elem reduce: trivial
        if tail:
            tail_x = flat[m_main * LANE:].astype(jnp.float32)
            total = total + jnp.sum(_per_elem_loss_f32(tail_x, gan_type, params[0]))
        if gan_type == "wgan-gp":
            total = total * params[1]                   # apply +-1 sign once
        return total / jnp.float32(n)

    return jax.jit(fn)


class GANLoss:
    """JAX/Pallas port of the PyTorch GANLoss module (forward pass)."""

    def __init__(self, gan_type, real_label_val=1.0, fake_label_val=0.0):
        self.gan_type = gan_type.lower()
        self.real_label_val = float(real_label_val)
        self.fake_label_val = float(fake_label_val)
        if self.gan_type not in ("gan", "ragan", "lsgan", "wgan-gp"):
            raise NotImplementedError(
                "GAN type [{:s}] is not found".format(self.gan_type))

    def __call__(self, x, target_is_real):
        target_is_real = bool(target_is_real)
        t = self.real_label_val if target_is_real else self.fake_label_val
        sign = -1.0 if target_is_real else 1.0           # wgan-gp sign
        params = jnp.array([t, sign], dtype=jnp.float32)
        fn = _build_loss_fn(self.gan_type, tuple(x.shape), int(x.dtype.itemsize))
        return fn(x, params)


def _reference(gan_type, x, target_is_real, real_val=1.0, fake_val=0.0):
    x = x.astype(jnp.float32)
    if gan_type == "wgan-gp":
        return -jnp.mean(x) if target_is_real else jnp.mean(x)
    t = real_val if target_is_real else fake_val
    if gan_type in ("gan", "ragan"):
        per = jnp.maximum(x, 0.0) - x * t + jnp.log1p(jnp.exp(-jnp.abs(x)))
        return jnp.mean(per)
    return jnp.mean((x - t) ** 2)  # lsgan


if __name__ == "__main__":
    key = jax.random.PRNGKey(0)
    # (2,4,16,16)      : the small discriminator logit map (1024-aligned).
    # (2,3,11,16)      : exercises the <128-element JAX tail path.
    # (2,4,96,96) f32  : multi-block grid + ragged last tile + 2-core split.
    # (2,4,96,96) bf16 : native-dtype streaming with in-register f32 upcast.
    cases = [
        ((2, 4, 16, 16), jnp.float32),
        ((2, 3, 11, 16), jnp.float32),
        ((2, 4, 96, 96), jnp.float32),
        ((2, 4, 96, 96), jnp.bfloat16),
    ]

    ok = True
    for ci, (shape, dtype) in enumerate(cases):
        x = jax.random.normal(jax.random.fold_in(key, ci), shape, dtype=dtype)
        for gan_type in ("gan", "ragan", "lsgan", "wgan-gp"):
            crit = GANLoss(gan_type, real_label_val=1.0, fake_label_val=0.0)
            for target_is_real in (True, False):
                got = jax.block_until_ready(crit(x, target_is_real))
                want = _reference(gan_type, x, target_is_real)
                if not jnp.allclose(got, want, rtol=1e-5, atol=1e-5):
                    ok = False
                    print(f"MISMATCH shape={shape} dtype={dtype} {gan_type} "
                          f"real={target_is_real}: {got} vs {want}")

    if ok:
        print("KERNEL_OK")
</pallas_src>

<mosaic_0001>
module attributes {stable_mosaic.version = 11 : i64} {
  func.func @_gan_loss_kernel(%arg0: i32, %arg1: i32, %arg2: memref<2xf32, #tpu.memory_space<smem>>, %arg3: memref<16x128xf32, #tpu.memory_space<vmem>>, %arg4: memref<1x8x128xf32, #tpu.memory_space<vmem>>, %arg5: memref<16x128xf32, #tpu.memory_space<vmem>>) attributes {dimension_semantics = [#tpu.dimension_semantics<parallel>, #tpu.dimension_semantics<arbitrary>], iteration_bounds = array<i64: 2, 1>, scalar_prefetch = 0 : i64, scratch_operands = 1 : i64, tpu.core_type = #tpu.core_type<tc>, window_params = [{transform_indices = @transform_0, window_bounds = array<i64: 2>}, {transform_indices = @transform_1, window_bounds = array<i64: 16, 128>}, {transform_indices = @transform_2, window_bounds = array<i64: 1, 8, 128>}]} {
    %c0_i32 = arith.constant 0 : i32
    %0 = arith.cmpi eq, %arg1, %c0_i32 : i32
    %1 = arith.extui %0 : i1 to i32
    %c0_i32_0 = arith.constant 0 : i32
    %2 = arith.cmpi ne, %1, %c0_i32_0 : i32
    scf.if %2 {
      %cst_10 = arith.constant 0.000000e+00 : f32
      %27 = vector.broadcast %cst_10 : f32 to vector<16x128xf32>
      %c0_11 = arith.constant 0 : index
      %c0_12 = arith.constant 0 : index
      %28 = vector.load %arg5[%c0_11, %c0_12] : memref<16x128xf32, #tpu.memory_space<vmem>>, vector<16x128xf32>
      tpu.vector_store %arg5[%c0_11, %c0_12], %27 {strides = array<i32>} : memref<16x128xf32, #tpu.memory_space<vmem>>, vector<16x128xf32>,
    } else {
    }
    %c1_i32 = arith.constant 1 : i32
    %3 = arith.muli %arg0, %c1_i32 : i32
    %4 = arith.addi %3, %arg1 : i32
    %c0 = arith.constant 0 : index
    %5 = memref.load %arg2[%c0] : memref<2xf32, #tpu.memory_space<smem>>
    %c0_1 = arith.constant 0 : index
    %c0_2 = arith.constant 0 : index
    %6 = vector.load %arg3[%c0_1, %c0_2] : memref<16x128xf32, #tpu.memory_space<vmem>>, vector<16x128xf32>
    %cst = arith.constant 0.000000e+00 : f32
    %7 = vector.broadcast %cst : f32 to vector<16x128xf32>
    %8 = arith.maximumf %6, %7 : vector<16x128xf32>
    %9 = vector.broadcast %5 : f32 to vector<16x128xf32>
    %10 = arith.mulf %6, %9 : vector<16x128xf32>
    %11 = arith.subf %8, %10 : vector<16x128xf32>
    %12 = math.absf %6 : vector<16x128xf32>
    %cst_3 = arith.constant 0.000000e+00 : f32
    %13 = vector.broadcast %cst_3 : f32 to vector<16x128xf32>
    %14 = arith.subf %13, %12 : vector<16x128xf32>
    %15 = math.exp %14 : vector<16x128xf32>
    %16 = math.log1p %15 : vector<16x128xf32>
    %17 = arith.addf %11, %16 : vector<16x128xf32>
    %c0_i32_4 = arith.constant 0 : i32
    %18 = arith.cmpi slt, %4, %c0_i32_4 : i32
    %19 = arith.extui %18 : i1 to i32
    %c0_i32_5 = arith.constant 0 : i32
    %20 = arith.cmpi ne, %19, %c0_i32_5 : i32
    scf.if %20 {
      %c0_10 = arith.constant 0 : index
      %c0_11 = arith.constant 0 : index
      %27 = vector.load %arg5[%c0_10, %c0_11] : memref<16x128xf32, #tpu.memory_space<vmem>>, vector<16x128xf32>
      %28 = arith.addf %27, %17 : vector<16x128xf32>
      %c0_12 = arith.constant 0 : index
      %c0_13 = arith.constant 0 : index
      %29 = vector.load %arg5[%c0_12, %c0_13] : memref<16x128xf32, #tpu.memory_space<vmem>>, vector<16x128xf32>
      tpu.vector_store %arg5[%c0_12, %c0_13], %28 {strides = array<i32>} : memref<16x128xf32, #tpu.memory_space<vmem>>, vector<16x128xf32>,
    } else {
    }
    %c0_i32_6 = arith.constant 0 : i32
    %21 = arith.cmpi eq, %4, %c0_i32_6 : i32
    %22 = arith.extui %21 : i1 to i32
    %c0_i32_7 = arith.constant 0 : i32
    %23 = arith.cmpi ne, %22, %c0_i32_7 : i32
    scf.if %23 {
      %c0_10 = arith.constant 0 : index
      %c0_11 = arith.constant 0 : index
      %27 = vector.load %arg5[%c0_10, %c0_11] : memref<16x128xf32, #tpu.memory_space<vmem>>, vector<16x128xf32>
      %28 = arith.addf %27, %17 : vector<16x128xf32>
      %c0_12 = arith.constant 0 : index
      %c0_13 = arith.constant 0 : index
      %29 = vector.load %arg5[%c0_12, %c0_13] : memref<16x128xf32, #tpu.memory_space<vmem>>, vector<16x128xf32>
      tpu.vector_store %arg5[%c0_12, %c0_13], %28 {strides = array<i32>} : memref<16x128xf32, #tpu.memory_space<vmem>>, vector<16x128xf32>,
    } else {
    }
    %c0_i32_8 = arith.constant 0 : i32
    %24 = arith.cmpi eq, %arg1, %c0_i32_8 : i32
    %25 = arith.extui %24 : i1 to i32
    %c0_i32_9 = arith.constant 0 : i32
    %26 = arith.cmpi ne, %25, %c0_i32_9 : i32
    scf.if %26 {
      %c0_10 = arith.constant 0 : index
      %c0_11 = arith.constant 0 : index
      %27 = vector.load %arg5[%c0_10, %c0_11] : memref<16x128xf32, #tpu.memory_space<vmem>>, vector<16x128xf32>
      %28 = vector.extract_strided_slice %27 {offsets = [0, 0], sizes = [8, 128], strides = [1, 1]} : vector<16x128xf32> to vector<8x128xf32>
      %29 = vector.extract_strided_slice %27 {offsets = [8, 0], sizes = [8, 128], strides = [1, 1]} : vector<16x128xf32> to vector<8x128xf32>
      %30 = arith.addf %28, %29 : vector<8x128xf32>
      %c0_12 = arith.constant 0 : index
      %c0_13 = arith.constant 0 : index
      %c0_14 = arith.constant 0 : index
      %31 = vector.load %arg4[%c0_12, %c0_13, %c0_14] : memref<1x8x128xf32, #tpu.memory_space<vmem>>, vector<1x8x128xf32>
      %32 = vector.shape_cast %31 : vector<1x8x128xf32> to vector<8x128xf32>
      %33 = vector.shape_cast %30 : vector<8x128xf32> to vector<1x8x128xf32>
      tpu.vector_store %arg4[%c0_12, %c0_13, %c0_14], %33 {strides = array<i32>} : memref<1x8x128xf32, #tpu.memory_space<vmem>>, vector<1x8x128xf32>,
    } else {
    }
    return
  }
  func.func @transform_0(%arg0: i32, %arg1: i32) -> i32 {
    %c0_i32 = arith.constant 0 : i32
    %c0_i32_0 = arith.constant 0 : i32
    return %c0_i32 : i32
  }
  func.func @transform_1(%arg0: i32, %arg1: i32) -> (i32, i32) {
    %c1_i32 = arith.constant 1 : i32
    %0 = arith.muli %arg0, %c1_i32 : i32
    %1 = arith.addi %0, %arg1 : i32
    %c0_i32 = arith.constant 0 : i32
    %2 = arith.minsi %1, %c0_i32 : i32
    %c0_i32_0 = arith.constant 0 : i32
    %c0_i32_1 = arith.constant 0 : i32
    return %2, %c0_i32_0 : i32, i32
  }
  func.func @transform_2(%arg0: i32, %arg1: i32) -> (i32, i32, i32) {
    %c0_i32 = arith.constant 0 : i32
    %c0_i32_0 = arith.constant 0 : i32
    %c0_i32_1 = arith.constant 0 : i32
    return %arg0, %c0_i32, %c0_i32_0 : i32, i32, i32
  }
}

</mosaic_0001>

<llo_original>
// kernel: fn.1
$region0: #{fn.1}
  #allocation0 [shape = 'u32[]', space=smem, size = 0x4, offset = 0x4, fixed_abs, tag = 'smem constant byte address 0x4 - core index']
  #allocation1 [shape = 'u32[144,128]{1,0:T(1,128)}', space=vmem, size = 0x12000, scoped, tag = 'internal scratch']
  #allocation2 [shape = 'f32[16,128]{1,0:T(8,128)}', space=vmem, size = 0x2000, scoped, tag = 'scratch operand']
  %s0 = inlined_call_operand.vmem [shape: f32[2], index: 0, kind: input, shape index: {}]
  %s1 = inlined_call_operand.vmem [shape: f32[16,128], index: 1, kind: input, shape index: {}]
  %s2 = inlined_call_operand.vmem [shape: f32[2,8,128], index: 2, kind: output, shape index: {}]
  %s3 = sld [smem:[#allocation0]]
  $region61: #{fn.1} parent=0
    _
  %s5 = ssub.s32 1, %s3
  %s6 = scalar_select 0, %s5, %s3
  $region1: #{fn.1} parent=0
    #allocation3 [shape = 'u8[512]{0}', space=smem, size = 0x200, scoped, tag = 'input window, operand 0, single buffered']
    #allocation4 [shape = 's32[2]{0}', space=sflag, size = 0x8, scoped, tag = 'scoped memory for fn.1']
    %7 = vsyncpa [#allocation4], 0
    loop: start=0, step=1, limit=4
    $region2: #{fn.1} parent=1 // loop_pre_header
      _
    $region3: #{fn.1} parent=1 // loop_header
      %s9 = sphi 0, %s13
      %p10 = scmp.ge.s32.totalorder %s9, 4
      %s16 = sphi 0, %s28
      %s17 = sphi 0, %s24
      %s18 = sphi 0, %s16
      %s19 = sphi 0, %s17
      %s20 = sphi 0, %s18
      %s21 = sphi 0, %s19
      %s29 = sphi 0, %s29
      %s31 = sphi 0, %s29
      %s32 = sphi 0, %s31
      %s46 = sphi 0, %s32
      %s58 = sphi 0, %s60
      %s61 = sphi 0, %s58
      %s62 = sphi 0, %s61
      %s78 = sphi 0, %s62
      %s84 = sphi 0, %s86
      %s87 = sphi 0, %s84
      %s88 = sphi 0, %s87
      %s104 = sphi 0, %s88
    $region4: #{fn.1} parent=1 // loop_header_branch
      %12 = sbr.rel (%p10) target = $region8
    $region5: #{fn.1} parent=1 // loop_body
      %s14 = ssub.s32 %s9, 1
      %s15 = ssub.s32 %s9, 2
      %s22 = sadd.s32 1, %s17
      %p23 = scmp.ge.s32.totalorder %s22, 1
      %s24 = scalar_select %p23, 0, %s22
      %s25 = sadd.s32 1, %s16
      %s26 = scalar_select %p23, %s25, %s16
      %p27 = scmp.ge.s32.totalorder %s26, 2
      %s28 = scalar_select %p27, 0, %s26
      %s30 = sadd.s32 %s29, 1
      %p33 = scmp.eq.s32.totalorder %s9, 1
      %p34 = scmp.ne.s32.totalorder %s29, %s31
      %p35 = scmp.eq.s32.totalorder %s9, 0
      %p36 = por %p34, %p35
      %p37 = scmp.ne.s32.totalorder %s29, %s31
      %p38 = scmp.eq.s32.totalorder %s14, 1
      %p39 = por %p37, %p38
      %p40 = scmp.ne.s32.totalorder %s31, %s32
      %p41 = scmp.eq.s32.totalorder %s14, 0
      %p42 = por %p40, %p41
      %p43 = scmp.ne.s32.totalorder %s31, %s32
      %p44 = scmp.eq.s32.totalorder %s15, 1
      %p45 = por %p43, %p44
      %p47 = scmp.ne.s32.totalorder %s32, %s46
      %p48 = scmp.eq.s32.totalorder %s15, 0
      %p49 = por %p47, %p48
      %s50 = sadd.s32 %s16, %s17
      %p51 = scmp.lt.s32.totalorder %s50, 0
      %s52 = scalar_select %p51, %s50, 0
      %s53 = sadd.s32 %s28, %s24
      %p54 = scmp.lt.s32.totalorder %s53, 0
      %s55 = scalar_select %p54, %s53, 0
      %s56 = ssub.s32 %s52, %s55
      %p57 = scmp.eq.s32.totalorder %s56, 0
      %s59 = sadd.s32 %s58, 1
      %s60 = scalar_select %p57, %s58, %s59
      %p63 = pneg %p57
      %p64 = scmp.eq.s32.totalorder %s9, 1
      %p65 = por %p63, %p64
      %p66 = scmp.ne.s32.totalorder %s58, %s61
      %p67 = scmp.eq.s32.totalorder %s9, 0
      %p68 = por %p66, %p67
      %p69 = scmp.ne.s32.totalorder %s58, %s61
      %p70 = scmp.eq.s32.totalorder %s14, 1
      %p71 = por %p69, %p70
      %p72 = scmp.ne.s32.totalorder %s61, %s62
      %p73 = scmp.eq.s32.totalorder %s14, 0
      %p74 = por %p72, %p73
      %p75 = scmp.ne.s32.totalorder %s61, %s62
      %p76 = scmp.eq.s32.totalorder %s15, 1
      %p77 = por %p75, %p76
      %p79 = scmp.ne.s32.totalorder %s62, %s78
      %p80 = scmp.eq.s32.totalorder %s15, 0
      %p81 = por %p79, %p80
      %s82 = ssub.s32 %s16, %s28
      %p83 = scmp.eq.s32.totalorder %s82, 0
      %s85 = sadd.s32 %s84, 1
      %s86 = scalar_select %p83, %s84, %s85
      %p89 = pneg %p83
      %p90 = scmp.eq.s32.totalorder %s9, 1
      %p91 = por %p89, %p90
      %p92 = scmp.ne.s32.totalorder %s84, %s87
      %p93 = scmp.eq.s32.totalorder %s9, 0
      %p94 = por %p92, %p93
      %p95 = scmp.ne.s32.totalorder %s84, %s87
      %p96 = scmp.eq.s32.totalorder %s14, 1
      %p97 = por %p95, %p96
      %p98 = scmp.ne.s32.totalorder %s87, %s88
      %p99 = scmp.eq.s32.totalorder %s14, 0
      %p100 = por %p98, %p99
      %p101 = scmp.ne.s32.totalorder %s87, %s88
      %p102 = scmp.eq.s32.totalorder %s15, 1
      %p103 = por %p101, %p102
      %p105 = scmp.ne.s32.totalorder %s88, %s104
      %p106 = scmp.eq.s32.totalorder %s15, 0
      %p107 = por %p105, %p106
      %p108 = scmp.le.s32.totalorder 1, %s9
      %p109 = scmp.lt.s32.totalorder %s9, 3
      %p110 = pnand %p108, %p109
      %p111 = pneg %p110
      // Predicated region
      $region9: #{fn.1} parent=5 // pred_check
        _
      $region10: #{fn.1} parent=5 // pred_check_branch
        %113 = sbr.rel (%p110) target = $region12
      $region11: #{fn.1} parent=5 // pred_region
        %s114 = ssub.s32 %s9, 1
        // Predicated region
        $region13: #{fn.1} parent=11 // pred_check
          %p115 = pneg %p42
        $region14: #{fn.1} parent=11 // pred_check_branch
          %117 = sbr.rel (%p115) target = $region16
        $region15: #{fn.1} parent=11 // pred_region
          %s119 = ssub.s32 16, 16
          %120 = vsyncadd [#allocation4], %s119
          %s122 = sshll.u32 %s0, 4
          %s123 = int_to_ptr.vmem [resolvable:$true] %s122
          %125 = dma.vmem_to_smem %s123, 16, [#allocation3], [#allocation4]
        $region16: #{fn.1} parent=11 // pred_fallthru
          _
      $region12: #{fn.1} parent=5 // pred_fallthru
        _
      %p126 = scmp.lt.s32.totalorder %s9, 2
      // Predicated region
      $region17: #{fn.1} parent=5 // pred_check
        %p127 = pneg %p126
      $region18: #{fn.1} parent=5 // pred_check_branch
        %129 = sbr.rel (%p127) target = $region20
      $region19: #{fn.1} parent=5 // pred_region
        // Predicated region
        $region21: #{fn.1} parent=19 // pred_check
          %p130 = pneg %p68
        $region22: #{fn.1} parent=19 // pred_check_branch
          %132 = sbr.rel (%p130) target = $region24
        $region23: #{fn.1} parent=19 // pred_region
          %s133 = sadd.s32 %s16, %s17
          %p134 = scmp.lt.s32.totalorder %s133, 0
          %s135 = scalar_select %p134, %s133, 0
          %s136 = smul.u32 2, %s135
          %p137 = scmp.lt.s32.totalorder %s136, 1
          %s138 = scalar_select %p137, %s136, 1
          %s139 = smul.addr %s138, 8
          %s140 = scalar_lea.vmem %s1, %s139
          %s141 = sadd.s32 %s16, %s17
          %p142 = scmp.lt.s32.totalorder %s141, 0
          %s143 = scalar_select %p142, %s141, 0
          %s144 = smul.u32 2, %s143
        $region24: #{fn.1} parent=19 // pred_fallthru
          _
      $region20: #{fn.1} parent=5 // pred_fallthru
        _
      %p145 = scmp.le.s32.totalorder 1, %s9
      %p146 = scmp.lt.s32.totalorder %s9, 3
      %p147 = pnand %p145, %p146
      %p148 = pneg %p147
      // Predicated region
      $region25: #{fn.1} parent=5 // pred_check
        _
      $region26: #{fn.1} parent=5 // pred_check_branch
        %150 = sbr.rel (%p147) target = $region28
      $region27: #{fn.1} parent=5 // pred_region
        %s151 = ssub.s32 %s9, 1
        // Predicated region
        $region29: #{fn.1} parent=27 // pred_check
          %p152 = pneg %p42
        $region30: #{fn.1} parent=27 // pred_check_branch
          %154 = sbr.rel (%p152) target = $region32
        $region31: #{fn.1} parent=27 // pred_region
          %155 = dma.done [#allocation4], 16
        $region32: #{fn.1} parent=27 // pred_fallthru
          _
        %156 = sfence
        %p157 = pneg %p42
        %p158 = pneg %p39
        %s159 = sadd.s32 %s18, %s19
        %p160 = scmp.lt.s32.totalorder %s159, 0
        %s161 = scalar_select %p160, %s159, 0
        %s162 = smul.u32 2, %s161
        %p163 = scmp.lt.s32.totalorder %s162, 1
        %s164 = scalar_select %p163, %s162, 1
        %s165 = smul.addr %s164, 8
        %s166 = scalar_lea.vmem %s1, %s165
        %p167 = pneg %p74
        %p168 = pneg %p71
        %p169 = pneg %p100
        %p170 = pneg %p97
        %p171 = scmp.lt.s32.totalorder %s18, 1
        %s172 = scalar_select %p171, %s18, 1
        %s173 = smul.addr %s172, 8
        %s174 = scalar_lea.vmem %s2, %s173
        %s175 = sadd.s32 %s18, %s19
        %p176 = scmp.lt.s32.totalorder %s175, 0
        %s177 = scalar_select %p176, %s175, 0
        %s178 = smul.u32 2, %s177
        %p179 = scmp.lt.s32.totalorder %s178, 1
        %s180 = scalar_select %p179, %s178, 1
        %s181 = smul.addr %s180, 8
        %s182 = scalar_lea.vmem %s1, %s181
        %s183 = sadd.s32 %s18, %s19
        %p184 = scmp.lt.s32.totalorder %s183, 0
        %s185 = scalar_select %p184, %s183, 0
        %s186 = smul.u32 2, %s185
        %p187 = scmp.lt.s32.totalorder %s18, 1
        %s188 = scalar_select %p187, %s18, 1
        %s189 = smul.addr %s188, 8
        %s190 = scalar_lea.vmem %s2, %s189
        %p191 = scmp.eq.s32.totalorder %s19, 0
        // Predicated region
        $region33: #{fn.1} parent=27 // pred_check
          %p192 = pneg %p191
        $region34: #{fn.1} parent=27 // pred_check_branch
          %194 = sbr.rel (%p192) target = $region36
        $region35: #{fn.1} parent=27 // pred_region
          %195 = vst [vmem:[#allocation2] sm:$0xff] 0.0
          %196 = vst [vmem:[#allocation2 + $0x8] sm:$0xff] 0.0
        $region36: #{fn.1} parent=27 // pred_fallthru
          _
        %s197 = sadd.s32 %s18, %s19
        %s198 = sld [smem:[#allocation3]]
        %v199 = vld [vmem:[%s182] sm:$0xff]
        %v200 = vld [vmem:[%s182 + $0x8] sm:$0xff]
        %v201 = vmax.f32 %v199, 0.0
        %v202 = vmax.f32 %v200, 0.0
        %v203 = vstv %s198
        %v204 = vmul.f32 %v199, %v203
        %v205 = vmul.f32 %v200, %v203
        %v206 = vsub.f32 %v201, %v204
        %v207 = vsub.f32 %v202, %v205
        %v208 = vand.u32 2147483647, %v199
        %v209 = vand.u32 2147483647, %v200
        %v210 = vsub.f32 0.0, %v208
        %v211 = vsub.f32 0.0, %v209
        %v212 = vmul.f32 %v210, 1.442695
        %v213 = vpow.pop %v212
        %v214 = vmul.f32 %v211, 1.442695
        %v215 = vpow.pop %v214
        %v216 = vadd.f32 %v213, 1.0
        %v217 = vlog2.pop %v216
        %v218 = vmul.f32 %v217, 0.6931472
        %v219 = vmul.f32 -0.5, %v213
        %v220 = vadd.f32 %v219, 1.0
        %v221 = vmul.f32 %v220, %v213
        %v222 = vand.u32 2147483647, %v213
        %vm223 = vcmp.lt.f32.partialorder %v222, 0.0004427343
        %v224 = vsel %vm223, %v221, %v218
        %v225 = vadd.f32 %v215, 1.0
        %v226 = vlog2.pop %v225
        %v227 = vmul.f32 %v226, 0.6931472
        %v228 = vmul.f32 -0.5, %v215
        %v229 = vadd.f32 %v228, 1.0
        %v230 = vmul.f32 %v229, %v215
        %v231 = vand.u32 2147483647, %v215
        %vm232 = vcmp.lt.f32.partialorder %v231, 0.0004427343
        %v233 = vsel %vm232, %v230, %v227
        %v234 = vadd.f32 %v206, %v224
        %v235 = vadd.f32 %v207, %v233
        %p236 = scmp.lt.s32.totalorder %s197, 0
        // Predicated region
        $region37: #{fn.1} parent=27 // pred_check
          %p237 = pneg %p236
        $region38: #{fn.1} parent=27 // pred_check_branch
          %239 = sbr.rel (%p237) target = $region40
        $region39: #{fn.1} parent=27 // pred_region
          %v240 = vld [vmem:[#allocation2] sm:$0xff]
          %v241 = vld [vmem:[#allocation2 + $0x8] sm:$0xff]
          %v242 = vadd.f32 %v240, %v234
          %v243 = vadd.f32 %v241, %v235
          %244 = vst [vmem:[#allocation2] sm:$0xff] %v242
          %245 = vst [vmem:[#allocation2 + $0x8] sm:$0xff] %v243
        $region40: #{fn.1} parent=27 // pred_fallthru
          _
        %p246 = scmp.eq.s32.totalorder %s197, 0
        // Predicated region
        $region41: #{fn.1} parent=27 // pred_check
          %p247 = pneg %p246
        $region42: #{fn.1} parent=27 // pred_check_branch
          %249 = sbr.rel (%p247) target = $region44
        $region43: #{fn.1} parent=27 // pred_region
          %v250 = vld [vmem:[#allocation2] sm:$0xff]
          %v251 = vld [vmem:[#allocation2 + $0x8] sm:$0xff]
          %v252 = vadd.f32 %v250, %v234
          %v253 = vadd.f32 %v251, %v235
          %254 = vst [vmem:[#allocation2] sm:$0xff] %v252
          %255 = vst [vmem:[#allocation2 + $0x8] sm:$0xff] %v253
        $region44: #{fn.1} parent=27 // pred_fallthru
          _
        // Predicated region
        $region45: #{fn.1} parent=27 // pred_check
          %p256 = pneg %p191
        $region46: #{fn.1} parent=27 // pred_check_branch
          %258 = sbr.rel (%p256) target = $region48
        $region47: #{fn.1} parent=27 // pred_region
          %v259 = vld [vmem:[#allocation2] sm:$0xff]
          %v260 = vld [vmem:[#allocation2 + $0x8] sm:$0xff]
          %v261 = vadd.f32 %v259, %v260
          %262 = vst [vmem:[%s190] sm:$0xff] %v261
        $region48: #{fn.1} parent=27 // pred_fallthru
          _
        %p263 = scmp.lt.s32.totalorder %s18, 1
        %s264 = scalar_select %p263, %s18, 1
        %s265 = smul.addr %s264, 8
        %s266 = scalar_lea.vmem %s2, %s265
        // Predicated region
        $region49: #{fn.1} parent=27 // pred_check
          %p267 = pneg %p97
        $region50: #{fn.1} parent=27 // pred_check_branch
          %269 = sbr.rel (%p267) target = $region52
        $region51: #{fn.1} parent=27 // pred_region
          _
        $region52: #{fn.1} parent=27 // pred_fallthru
          _
      $region28: #{fn.1} parent=5 // pred_fallthru
        _
      %p270 = scmp.le.s32.totalorder 2, %s9
      // Predicated region
      $region53: #{fn.1} parent=5 // pred_check
        %p271 = pneg %p270
      $region54: #{fn.1} parent=5 // pred_check_branch
        %273 = sbr.rel (%p271) target = $region56
      $region55: #{fn.1} parent=5 // pred_region
        %s274 = ssub.s32 %s9, 2
        // Predicated region
        $region57: #{fn.1} parent=55 // pred_check
          %p275 = pneg %p103
        $region58: #{fn.1} parent=55 // pred_check_branch
          %277 = sbr.rel (%p275) target = $region60
        $region59: #{fn.1} parent=55 // pred_region
          %p278 = scmp.lt.s32.totalorder %s20, 1
          %s279 = scalar_select %p278, %s20, 1
          %s280 = smul.addr %s279, 8
          %s281 = scalar_lea.vmem %s2, %s280
        $region60: #{fn.1} parent=55 // pred_fallthru
          _
      $region56: #{fn.1} parent=5 // pred_fallthru
        _
    $region6: #{fn.1} parent=1 // loop_footer
      %s13 = sadd.s32 1, %s9
    $region7: #{fn.1} parent=1 // loop_footer_branch
      %8 = sbr.rel target = $region3
    $region8: #{fn.1} parent=1 // loop_exit
      _
    %282 = vsyncpa [#allocation4], 1
    %s283 = scalar_lea.sflag [#allocation4], 1
    %284 = vsyncpa %s283, 1

</llo_original>
